<compile_context>
chip_gen: v6e
topology: v6e:2x2x1
jax: 0.10.0
libtpu: 0.0.40
codegen_flags: <defaults>
</compile_context>

<pallas_src>
import numpy as np
import jax
import jax.numpy as jnp
from jax.experimental import pallas as pl
from jax.experimental.pallas import tpu as pltpu


def _round_up(n, m):
    return ((n + m - 1) // m) * m


def _tree_kernel(x_ref, wt_ref, bt_ref, lmt_ref, rmt_ref, leaf_cls_ref, out_ref):
    # x_ref:        (TB, F)   native-layout input tile (streamed / double-buffered)
    # wt_ref:       (N2, F)   beta-folded inner-node weights (resident, N padded to 8)
    # bt_ref:       (N2, 1)   beta-folded inner-node biases
    # lmt_ref/rmt_ref: (L, N2) left/right route masks (leaf-major)
    # leaf_cls_ref: (L, 1)    int32 precomputed per-leaf argmax class
    # out_ref:      (1, TB)   int32 predicted class per sample (lane-dense)

    # --- inner-node pre-activations: one MXU matmul contracting over F.
    # Batch lands on lanes; the transposed RHS is handled by the MXU/XLU (no HBM copy).
    z = jax.lax.dot_general(
        wt_ref[...], x_ref[...],
        dimension_numbers=(((1,), (1,)), ((), ())),
        preferred_element_type=jnp.float32) + bt_ref[...]                  # (N2, TB)

    # --- stable log-sigmoid for both branches (shares the exp/log EUP work) ---
    c = jnp.log(1.0 + jnp.exp(-jnp.abs(z)))   # softplus(-|z|)
    log_p = jnp.minimum(z, 0.0) - c           # log sigmoid(z)    -> left branch
    log_q = log_p - z                         # log sigmoid(-z)   -> right branch

    # --- leaf log path-probabilities via two tiny MXU matmuls (monotone == product) ---
    log_path = (jnp.dot(lmt_ref[...], log_p, preferred_element_type=jnp.float32)
                + jnp.dot(rmt_ref[...], log_q, preferred_element_type=jnp.float32))  # (L, TB)

    L, TB = log_path.shape

    # --- argmax over leaves (sublane reduce), first-max tie break like Python max() ---
    mx = jnp.max(log_path, axis=0, keepdims=True)                          # (1, TB)
    leaf_iota = jax.lax.broadcasted_iota(jnp.int32, (L, TB), 0)
    best_leaf = jnp.min(jnp.where(log_path >= mx, leaf_iota, L),
                        axis=0, keepdims=True)                             # (1, TB)

    # --- pick the precomputed class of the winning leaf (pure int32 path) ---
    sel = leaf_iota == best_leaf                                           # (L, TB)
    out_ref[...] = jnp.max(jnp.where(sel, leaf_cls_ref[...], 0),
                           axis=0, keepdims=True)                          # (1, TB) int32


def decision_tree_forward(x, W, b, beta, leaf_logits_T, lmask, rmask, *,
                          block_batch=16384):
    """x: (B, F); W: (F, N); b/beta: (1, N); leaf_logits_T: (C, L); masks: (N, L).
    Returns int32 (B,) predicted class indices."""
    B, F = x.shape
    N = W.shape[1]
    L = lmask.shape[1]
    N2 = _round_up(N, 8)                       # one full sublane tile for the node axis

    # Fold beta into the linear layer, hoist the x-independent leaf argmax, pad N->N2.
    wt = jnp.zeros((N2, F), jnp.float32).at[:N, :].set((W * beta).T)        # (N2, F)
    bt = jnp.zeros((N2, 1), jnp.float32).at[:N, 0].set((b * beta)[0])       # (N2, 1)
    lmt = jnp.zeros((L, N2), jnp.float32).at[:, :N].set(lmask.T)            # (L, N2)
    rmt = jnp.zeros((L, N2), jnp.float32).at[:, :N].set(rmask.T)            # (L, N2)
    leaf_cls = jnp.argmax(leaf_logits_T, axis=0).astype(jnp.int32).reshape(L, 1)

    # --- batch tile selection ---------------------------------------------------
    # Large, 128-multiple tiles amortize per-grid-step overhead; clamp so large
    # batches keep >=2 grid steps (v7x two-TC split + DMA/compute overlap).
    if B >= 128:
        tb = _round_up(min(block_batch, B), 128)
        if B >= 256:
            tb = min(tb, _round_up(pl.cdiv(B, 2), 128))
    else:
        tb = B                                   # tiny batch: single full block
    grid = (pl.cdiv(B, tb),)

    # VMEM budget: 2 double-buffered x tiles + ~a dozen (<=8, tb)/(L, tb) f32
    # intermediates + headroom. Raise the scoped-VMEM limit accordingly.
    itemsize = jnp.dtype(x.dtype).itemsize
    est_vmem = 2 * tb * F * itemsize + 20 * tb * max(8, L) * 4 + (2 << 20)
    vmem_limit = int(min(max(est_vmem, 16 << 20), 48 << 20))

    cost = pl.CostEstimate(
        flops=int(2 * N2 * F * B + 4 * L * N2 * B + 12 * N2 * B),
        transcendentals=int(2 * N2 * B),
        bytes_accessed=int(B * F * itemsize + B * 4
                           + (N2 * F + N2 + 2 * L * N2 + L) * 4),
    )

    out = pl.pallas_call(
        _tree_kernel,
        out_shape=jax.ShapeDtypeStruct((1, B), jnp.int32),
        grid_spec=pltpu.PrefetchScalarGridSpec(
            num_scalar_prefetch=0,
            grid=grid,
            in_specs=[
                pl.BlockSpec((tb, F), lambda i: (i, 0)),    # streamed native-layout x
                pl.BlockSpec((N2, F), lambda i: (0, 0)),    # resident weights
                pl.BlockSpec((N2, 1), lambda i: (0, 0)),
                pl.BlockSpec((L, N2), lambda i: (0, 0)),
                pl.BlockSpec((L, N2), lambda i: (0, 0)),
                pl.BlockSpec((L, 1), lambda i: (0, 0)),
            ],
            out_specs=pl.BlockSpec((1, tb), lambda i: (0, i)),
        ),
        compiler_params=pltpu.CompilerParams(
            dimension_semantics=("parallel",),              # v7x: shard batch over both TCs
            vmem_limit_bytes=vmem_limit,
        ),
        cost_estimate=cost,
    )(x, wt, bt, lmt, rmt, leaf_cls)

    return out[0]


def build_route_masks(depth):
    """left/right masks of shape (n_inner, n_leaves); leaves in left-to-right DFS order."""
    n_inner = 2 ** depth - 1
    n_leaves = 2 ** depth
    lm = np.zeros((n_inner, n_leaves), np.float32)
    rm = np.zeros((n_inner, n_leaves), np.float32)
    for leaf in range(n_leaves):
        node = 0
        for level in range(depth):
            bit = (leaf >> (depth - 1 - level)) & 1
            if bit == 0:
                lm[node, leaf] = 1.0
                node = 2 * node + 1
            else:
                rm[node, leaf] = 1.0
                node = 2 * node + 2
    return jnp.asarray(lm), jnp.asarray(rm)


def reference_forward(x, W, b, beta, leaf_logits_T, lmask, rmask):
    """Pure-JAX reference in the original product space (for correctness check)."""
    p = jax.nn.sigmoid(beta * (x @ W + b))                       # (B, N)
    factors = (p[:, :, None] * lmask[None]
               + (1.0 - p[:, :, None]) * rmask[None]
               + (1.0 - lmask - rmask)[None])                    # (B, N, L)
    probs = jnp.prod(factors, axis=1)                            # (B, L)
    best_leaf = jnp.argmax(probs, axis=-1)                       # (B,)
    leaf_cls = jnp.argmax(leaf_logits_T, axis=0)                 # (L,)
    return leaf_cls[best_leaf].astype(jnp.int32)


if __name__ == "__main__":
    # Shapes consistent with the module: DecisionTree(max_depth=3, input_dim=32, output_dim=16)
    max_depth = 3
    input_dim = 32
    output_dim = 16
    n_inner = 2 ** max_depth - 1          # 7 inner nodes (Linear(input_dim,1) + beta each)
    n_leaves = 2 ** max_depth             # 8 leaves (one class-logit vector each)

    lmask, rmask = build_route_masks(max_depth)

    def make_params(key):
        kw, kb, kbeta, kleaf = jax.random.split(key, 4)
        W = jax.random.normal(kw, (input_dim, n_inner), dtype=jnp.float32) / np.sqrt(input_dim)
        b = jax.random.normal(kb, (1, n_inner), dtype=jnp.float32) * 0.1
        beta = jax.random.normal(kbeta, (1, n_inner), dtype=jnp.float32)
        leaf_logits_T = jax.random.normal(kleaf, (output_dim, n_leaves), dtype=jnp.float32)
        return W, b, beta, leaf_logits_T

    # --- small batch (single full block) ---
    key = jax.random.PRNGKey(0)
    kx, kp = jax.random.split(key)
    W, b, beta, leaf_logits_T = make_params(kp)
    x = jax.random.normal(kx, (8, input_dim), dtype=jnp.float32)

    out = decision_tree_forward(x, W, b, beta, leaf_logits_T, lmask, rmask)
    out = jax.block_until_ready(out)
    ref = np.asarray(reference_forward(x, W, b, beta, leaf_logits_T, lmask, rmask))
    np.testing.assert_array_equal(np.asarray(out), ref)

    # --- larger batch (exercises multi-step grid / pipelined x tiles) ---
    kx2 = jax.random.PRNGKey(1)
    x2 = jax.random.normal(kx2, (512, input_dim), dtype=jnp.float32)
    out2 = decision_tree_forward(x2, W, b, beta, leaf_logits_T, lmask, rmask)
    out2 = jax.block_until_ready(out2)
    ref2 = np.asarray(reference_forward(x2, W, b, beta, leaf_logits_T, lmask, rmask))
    np.testing.assert_array_equal(np.asarray(out2), ref2)

    print("KERNEL_OK")
</pallas_src>

<mosaic_0001>
module attributes {stable_mosaic.version = 11 : i64} {
  func.func @_tree_kernel(%arg0: i32, %arg1: memref<8x32xf32, #tpu.memory_space<vmem>>, %arg2: memref<8x32xf32, #tpu.memory_space<vmem>>, %arg3: memref<8x1xf32, #tpu.memory_space<vmem>>, %arg4: memref<8x8xf32, #tpu.memory_space<vmem>>, %arg5: memref<8x8xf32, #tpu.memory_space<vmem>>, %arg6: memref<8x1xi32, #tpu.memory_space<vmem>>, %arg7: memref<1x8xi32, #tpu.memory_space<vmem>>) attributes {dimension_semantics = [#tpu.dimension_semantics<parallel>], iteration_bounds = array<i64: 1>, scalar_prefetch = 0 : i64, scratch_operands = 0 : i64, tpu.core_type = #tpu.core_type<tc>, window_params = [{transform_indices = @transform_0, window_bounds = array<i64: 8, 32>}, {pipeline_mode = #tpu.pipeline_mode<synchronous>, transform_indices = @transform_1, window_bounds = array<i64: 8, 32>}, {pipeline_mode = #tpu.pipeline_mode<synchronous>, transform_indices = @transform_2, window_bounds = array<i64: 8, 1>}, {pipeline_mode = #tpu.pipeline_mode<synchronous>, transform_indices = @transform_3, window_bounds = array<i64: 8, 8>}, {pipeline_mode = #tpu.pipeline_mode<synchronous>, transform_indices = @transform_4, window_bounds = array<i64: 8, 8>}, {pipeline_mode = #tpu.pipeline_mode<synchronous>, transform_indices = @transform_5, window_bounds = array<i64: 8, 1>}, {transform_indices = @transform_6, window_bounds = array<i64: 1, 8>}]} {
    %c0 = arith.constant 0 : index
    %c0_0 = arith.constant 0 : index
    %0 = vector.load %arg2[%c0, %c0_0] : memref<8x32xf32, #tpu.memory_space<vmem>>, vector<8x32xf32>
    %c0_1 = arith.constant 0 : index
    %c0_2 = arith.constant 0 : index
    %1 = vector.load %arg1[%c0_1, %c0_2] : memref<8x32xf32, #tpu.memory_space<vmem>>, vector<8x32xf32>
    %cst = arith.constant dense<0.000000e+00> : vector<8x8xf32>
    %2 = tpu.matmul %0, %1, %cst {dimension_numbers = #tpu.dot_dimension_numbers<[1], [1], [0], [0], [0, 0, 1, 0], [], []>} : vector<8x32xf32>, vector<8x32xf32>, vector<8x8xf32> -> vector<8x8xf32>
    %c0_3 = arith.constant 0 : index
    %c0_4 = arith.constant 0 : index
    %3 = vector.load %arg3[%c0_3, %c0_4] : memref<8x1xf32, #tpu.memory_space<vmem>>, vector<8x1xf32>
    %4 = vector.broadcast %3 : vector<8x1xf32> to vector<8x8xf32>
    %5 = arith.addf %2, %4 : vector<8x8xf32>
    %6 = math.absf %5 : vector<8x8xf32>
    %cst_5 = arith.constant 0.000000e+00 : f32
    %7 = vector.broadcast %cst_5 : f32 to vector<8x8xf32>
    %8 = arith.subf %7, %6 : vector<8x8xf32>
    %9 = math.exp %8 : vector<8x8xf32>
    %cst_6 = arith.constant 1.000000e+00 : f32
    %10 = vector.broadcast %cst_6 : f32 to vector<8x8xf32>
    %11 = arith.addf %10, %9 : vector<8x8xf32>
    %12 = math.log %11 : vector<8x8xf32>
    %cst_7 = arith.constant 0.000000e+00 : f32
    %13 = vector.broadcast %cst_7 : f32 to vector<8x8xf32>
    %14 = arith.minimumf %5, %13 : vector<8x8xf32>
    %15 = arith.subf %14, %12 : vector<8x8xf32>
    %16 = arith.subf %15, %5 : vector<8x8xf32>
    %c0_8 = arith.constant 0 : index
    %c0_9 = arith.constant 0 : index
    %17 = vector.load %arg4[%c0_8, %c0_9] : memref<8x8xf32, #tpu.memory_space<vmem>>, vector<8x8xf32>
    %cst_10 = arith.constant dense<0.000000e+00> : vector<8x8xf32>
    %18 = tpu.matmul %17, %15, %cst_10 {dimension_numbers = #tpu.dot_dimension_numbers<[1], [0], [0], [1], [0, 0, 1, 1], [], []>} : vector<8x8xf32>, vector<8x8xf32>, vector<8x8xf32> -> vector<8x8xf32>
    %c0_11 = arith.constant 0 : index
    %c0_12 = arith.constant 0 : index
    %19 = vector.load %arg5[%c0_11, %c0_12] : memref<8x8xf32, #tpu.memory_space<vmem>>, vector<8x8xf32>
    %cst_13 = arith.constant dense<0.000000e+00> : vector<8x8xf32>
    %20 = tpu.matmul %19, %16, %cst_13 {dimension_numbers = #tpu.dot_dimension_numbers<[1], [0], [0], [1], [0, 0, 1, 1], [], []>} : vector<8x8xf32>, vector<8x8xf32>, vector<8x8xf32> -> vector<8x8xf32>
    %21 = arith.addf %18, %20 : vector<8x8xf32>
    %cst_14 = arith.constant dense<0xFF800000> : vector<8xf32>
    %22 = vector.multi_reduction <maximumf>, %21, %cst_14 [0] : vector<8x8xf32> to vector<8xf32>
    %23 = vector.shape_cast %22 : vector<8xf32> to vector<1x8xf32>
    %24 = tpu.iota {dimensions = array<i32: 0>} : vector<8x8xi32>
    %25 = vector.broadcast %23 : vector<1x8xf32> to vector<8x8xf32>
    %26 = arith.cmpf oge, %21, %25 : vector<8x8xf32>
    %c8_i32 = arith.constant 8 : i32
    %27 = vector.broadcast %c8_i32 : i32 to vector<8x8xi32>
    %28 = arith.select %26, %24, %27 : vector<8x8xi1>, vector<8x8xi32>
    %cst_15 = arith.constant dense<2147483647> : vector<8xi32>
    %29 = vector.multi_reduction <minsi>, %28, %cst_15 [0] : vector<8x8xi32> to vector<8xi32>
    %30 = vector.shape_cast %29 : vector<8xi32> to vector<1x8xi32>
    %31 = vector.broadcast %30 : vector<1x8xi32> to vector<8x8xi32>
    %32 = arith.cmpi eq, %24, %31 : vector<8x8xi32>
    %c0_16 = arith.constant 0 : index
    %c0_17 = arith.constant 0 : index
    %33 = vector.load %arg6[%c0_16, %c0_17] : memref<8x1xi32, #tpu.memory_space<vmem>>, vector<8x1xi32>
    %c0_i32 = arith.constant 0 : i32
    %34 = vector.shape_cast %33 : vector<8x1xi32> to vector<8x1xi32>
    %35 = vector.broadcast %34 : vector<8x1xi32> to vector<8x8xi32>
    %36 = vector.broadcast %c0_i32 : i32 to vector<8x8xi32>
    %37 = arith.select %32, %35, %36 : vector<8x8xi1>, vector<8x8xi32>
    %cst_18 = arith.constant dense<-2147483648> : vector<8xi32>
    %38 = vector.multi_reduction <maxsi>, %37, %cst_18 [0] : vector<8x8xi32> to vector<8xi32>
    %39 = vector.shape_cast %38 : vector<8xi32> to vector<1x8xi32>
    %c0_19 = arith.constant 0 : index
    %c0_20 = arith.constant 0 : index
    %40 = vector.load %arg7[%c0_19, %c0_20] : memref<1x8xi32, #tpu.memory_space<vmem>>, vector<1x8xi32>
    tpu.vector_store %arg7[%c0_19, %c0_20], %39 {strides = array<i32>} : memref<1x8xi32, #tpu.memory_space<vmem>>, vector<1x8xi32>,
    return
  }
  func.func @transform_0(%arg0: i32) -> (i32, i32) {
    %c0_i32 = arith.constant 0 : i32
    %c0_i32_0 = arith.constant 0 : i32
    return %arg0, %c0_i32 : i32, i32
  }
  func.func @transform_1(%arg0: i32) -> (i32, i32) {
    %c0_i32 = arith.constant 0 : i32
    %c0_i32_0 = arith.constant 0 : i32
    %c0_i32_1 = arith.constant 0 : i32
    return %c0_i32, %c0_i32_0 : i32, i32
  }
  func.func @transform_2(%arg0: i32) -> (i32, i32) {
    %c0_i32 = arith.constant 0 : i32
    %c0_i32_0 = arith.constant 0 : i32
    %c0_i32_1 = arith.constant 0 : i32
    return %c0_i32, %c0_i32_0 : i32, i32
  }
  func.func @transform_3(%arg0: i32) -> (i32, i32) {
    %c0_i32 = arith.constant 0 : i32
    %c0_i32_0 = arith.constant 0 : i32
    %c0_i32_1 = arith.constant 0 : i32
    return %c0_i32, %c0_i32_0 : i32, i32
  }
  func.func @transform_4(%arg0: i32) -> (i32, i32) {
    %c0_i32 = arith.constant 0 : i32
    %c0_i32_0 = arith.constant 0 : i32
    %c0_i32_1 = arith.constant 0 : i32
    return %c0_i32, %c0_i32_0 : i32, i32
  }
  func.func @transform_5(%arg0: i32) -> (i32, i32) {
    %c0_i32 = arith.constant 0 : i32
    %c0_i32_0 = arith.constant 0 : i32
    %c0_i32_1 = arith.constant 0 : i32
    return %c0_i32, %c0_i32_0 : i32, i32
  }
  func.func @transform_6(%arg0: i32) -> (i32, i32) {
    %c0_i32 = arith.constant 0 : i32
    %c0_i32_0 = arith.constant 0 : i32
    return %c0_i32, %arg0 : i32, i32
  }
}

</mosaic_0001>

<llo_original>
// kernel: tpu_custom_call.1
$region0: #{tpu_custom_call.1}
  #allocation0 [shape = 'u32[]', space=smem, size = 0x4, offset = 0x4, fixed_abs, tag = 'smem constant byte address 0x4 - core index']
  #allocation1 [shape = 'u32[144,128]{1,0:T(1,128)}', space=vmem, size = 0x12000, scoped, tag = 'internal scratch']
  %s0 = inlined_call_operand.vmem [shape: f32[8,32], index: 0, kind: input, shape index: {}]
  %s1 = inlined_call_operand.vmem [shape: f32[8,32], index: 1, kind: input, shape index: {}]
  %s2 = inlined_call_operand.vmem [shape: f32[8,1], index: 2, kind: input, shape index: {}]
  %s3 = inlined_call_operand.hbm [shape: f32[8,8], index: 3, kind: input, shape index: {}]
  %s4 = inlined_call_operand.vmem [shape: f32[8,8], index: 4, kind: input, shape index: {}]
  %s5 = inlined_call_operand.vmem [shape: s32[8,1], index: 5, kind: input, shape index: {}]
  %s6 = inlined_call_operand.hbm [shape: s32[1,8], index: 6, kind: output, shape index: {}]
  %s7 = sld [smem:[#allocation0]]
  $region38: #{tpu_custom_call.1} parent=0
    _
  %s9 = ssub.s32 1, %s7
  %s10 = scalar_select 0, %s9, %s7
  $region1: #{tpu_custom_call.1} parent=0
    #allocation2 [shape = 'u8[4096]{0}', space=vmem, size = 0x1000, scoped, tag = 'input window, operand 3, single buffered']
    #allocation3 [shape = 's32[1]{0}', space=sflag, size = 0x4, scoped, tag = 'scoped memory for tpu_custom_call.1']
    #allocation4 [shape = 's32[1]{0}', space=sflag, size = 0x4, scoped, tag = 'scoped memory for tpu_custom_call.1']
    #allocation5 [shape = 'u8[512]{0}', space=vmem, size = 0x400, scoped, tag = 'output window, operand 0, single buffered']
    %11 = vsyncpa [#allocation3], 0
    %12 = vsyncpa [#allocation4], 0
    // Predicated region
    $region2: #{tpu_custom_call.1} parent=1 // pred_check
      _
    $region3: #{tpu_custom_call.1} parent=1 // pred_check_branch
      %14 = sbr.rel (0) target = $region5
    $region4: #{tpu_custom_call.1} parent=1 // pred_region
      _
    $region5: #{tpu_custom_call.1} parent=1 // pred_fallthru
      _
    // Predicated region
    $region6: #{tpu_custom_call.1} parent=1 // pred_check
      _
    $region7: #{tpu_custom_call.1} parent=1 // pred_check_branch
      %16 = sbr.rel (0) target = $region9
    $region8: #{tpu_custom_call.1} parent=1 // pred_region
      _
    $region9: #{tpu_custom_call.1} parent=1 // pred_fallthru
      _
    // Predicated region
    $region10: #{tpu_custom_call.1} parent=1 // pred_check
      _
    $region11: #{tpu_custom_call.1} parent=1 // pred_check_branch
      %18 = sbr.rel (0) target = $region13
    $region12: #{tpu_custom_call.1} parent=1 // pred_region
      _
    $region13: #{tpu_custom_call.1} parent=1 // pred_fallthru
      _
    // Predicated region
    $region14: #{tpu_custom_call.1} parent=1 // pred_check
      _
    $region15: #{tpu_custom_call.1} parent=1 // pred_check_branch
      %20 = sbr.rel (0) target = $region17
    $region16: #{tpu_custom_call.1} parent=1 // pred_region
      %s22 = ssub.s32 128, 128
      %23 = vsyncadd [#allocation3], %s22
      %s25 = sshll.u32 [#allocation2], 4
      %s26 = int_to_ptr.vmem [resolvable:$true] %s25
      %28 = dma.hbm_to_vmem [thread:$0]  %s3, 128, %s26, [#allocation3]
    $region17: #{tpu_custom_call.1} parent=1 // pred_fallthru
      _
    // Predicated region
    $region18: #{tpu_custom_call.1} parent=1 // pred_check
      _
    $region19: #{tpu_custom_call.1} parent=1 // pred_check_branch
      %30 = sbr.rel (0) target = $region21
    $region20: #{tpu_custom_call.1} parent=1 // pred_region
      _
    $region21: #{tpu_custom_call.1} parent=1 // pred_fallthru
      _
    // Predicated region
    $region22: #{tpu_custom_call.1} parent=1 // pred_check
      _
    $region23: #{tpu_custom_call.1} parent=1 // pred_check_branch
      %32 = sbr.rel (0) target = $region25
    $region24: #{tpu_custom_call.1} parent=1 // pred_region
      _
    $region25: #{tpu_custom_call.1} parent=1 // pred_fallthru
      _
    // Predicated region
    $region26: #{tpu_custom_call.1} parent=1 // pred_check
      _
    $region27: #{tpu_custom_call.1} parent=1 // pred_check_branch
      %34 = sbr.rel (0) target = $region29
    $region28: #{tpu_custom_call.1} parent=1 // pred_region
      %35 = dma.done [#allocation3], 128
    $region29: #{tpu_custom_call.1} parent=1 // pred_fallthru
      _
    %v36 = vld [vmem:[%s1] sm:$0xff]
    %v37 = vld [vmem:[%s0] sm:$0xff]
    %v38 = vld [vmem:[%s2] sm:$0xff]
    %40 = vset.pattern.permute.xlu0 0
    %41 = vperm.xlu0 %40, %v38
    %v42 = vpop.permute.xlu0 %41
    %vm44 = vcmask 261120
    %v46 = vsel %vm44, %v36, 0
    %v49 = vsel %vm44, %v37, 0
    %51 = vmatprep.subr.mxu0 0.0
    %52 = vmatpush1.xpose.msra.mxu0 0.0
    %53 = vmatprep.subr.mxu0 0.0
    %54 = vmatpush1.xpose.msra.mxu0 0.0
    %55 = vmatprep.subr.mxu0 0.0
    %56 = vmatpush1.xpose.msra.mxu0 0.0
    %57 = vmatprep.subr.mxu0 0.0
    %58 = vmatpush1.xpose.msra.mxu0 0.0
    %59 = vmatprep.subr.mxu0 0.0
    %60 = vmatpush1.xpose.msra.mxu0 0.0
    %61 = vmatprep.subr.mxu0 0.0
    %62 = vmatpush1.xpose.msra.mxu0 0.0
    %63 = vmatprep.subr.mxu0 0.0
    %64 = vmatpush1.xpose.msra.mxu0 0.0
    %65 = vmatprep.subr.mxu0 0.0
    %66 = vmatpush1.xpose.msra.mxu0 0.0
    %67 = vmatprep.subr.mxu0 0.0
    %68 = vmatpush1.xpose.msra.mxu0 0.0
    %69 = vmatprep.subr.mxu0 0.0
    %70 = vmatpush1.xpose.msra.mxu0 0.0
    %71 = vmatprep.subr.mxu0 0.0
    %72 = vmatpush1.xpose.msra.mxu0 0.0
    %73 = vmatprep.subr.mxu0 0.0
    %74 = vmatpush1.xpose.msra.mxu0 0.0
    %75 = vmatprep.subr.mxu0 0.0
    %76 = vmatpush1.xpose.msra.mxu0 0.0
    %77 = vmatprep.subr.mxu0 0.0
    %78 = vmatpush1.xpose.msra.mxu0 0.0
    %79 = vmatprep.subr.mxu0 0.0
    %80 = vmatpush1.xpose.msra.mxu0 0.0
    %81 = vmatprep.subr.mxu0 0.0
    %82 = vmatpush1.xpose.msra.mxu0 %v49
    %83 = vmatprep.subr.mxu0 0.0
    %84 = vmatpush2.xpose.msra.mxu0 0.0
    %85 = vmatprep.subr.mxu0 0.0
    %86 = vmatpush2.xpose.msra.mxu0 0.0
    %87 = vmatprep.subr.mxu0 0.0
    %88 = vmatpush2.xpose.msra.mxu0 0.0
    %89 = vmatprep.subr.mxu0 0.0
    %90 = vmatpush2.xpose.msra.mxu0 0.0
    %91 = vmatprep.subr.mxu0 0.0
    %92 = vmatpush2.xpose.msra.mxu0 0.0
    %93 = vmatprep.subr.mxu0 0.0
    %94 = vmatpush2.xpose.msra.mxu0 0.0
    %95 = vmatprep.subr.mxu0 0.0
    %96 = vmatpush2.xpose.msra.mxu0 0.0
    %97 = vmatprep.subr.mxu0 0.0
    %98 = vmatpush2.xpose.msra.mxu0 0.0
    %99 = vmatprep.subr.mxu0 0.0
    %100 = vmatpush2.xpose.msra.mxu0 0.0
    %101 = vmatprep.subr.mxu0 0.0
    %102 = vmatpush2.xpose.msra.mxu0 0.0
    %103 = vmatprep.subr.mxu0 0.0
    %104 = vmatpush2.xpose.msra.mxu0 0.0
    %105 = vmatprep.subr.mxu0 0.0
    %106 = vmatpush2.xpose.msra.mxu0 0.0
    %107 = vmatprep.subr.mxu0 0.0
    %108 = vmatpush2.xpose.msra.mxu0 0.0
    %109 = vmatprep.subr.mxu0 0.0
    %110 = vmatpush2.xpose.msra.mxu0 0.0
    %111 = vmatprep.subr.mxu0 0.0
    %112 = vmatpush2.xpose.msra.mxu0 0.0
    %113 = vmatprep.subr.mxu0 0.0
    %114 = vmatpush2.xpose.msra.mxu0 0.0
    %115 = vmatprep.mubr.f32.mxu0 0.0
    %116 = vmatmul.mubr.f32.gmra.mxu0 %v46
    %v117 = vpop.f32.mrf.mxu0
    %v118 = vadd.f32 %v42, %v117
    %v119 = vpop.f32.mrf.mxu0
    %120 = vdwg.mxu0
    %v121 = vand.u32 2147483647, %v118
    %v122 = vsub.f32 0.0, %v121
    %v123 = vmul.f32 %v122, 1.442695
    %v124 = vpow.pop %v123
    %v125 = vadd.f32 %v124, 1.0
    %v126 = vlog2.pop %v125
    %v127 = vmul.f32 %v126, 0.6931472
    %v128 = vmin.f32 %v118, 0.0
    %v129 = vsub.f32 %v128, %v127
    %v130 = vsub.f32 %v129, %v118
    %v131 = vld [vmem:[#allocation2] sm:$0xff]
    %v132 = vld [vmem:[%s4] sm:$0xff]
    %vm133 = vcmask 64512
    %v135 = vsel %vm133, %v132, 0
    %137 = vmatprep.subr.mxu0 0.0
    %138 = vmatpush1.msra.mxu0 0.0
    %139 = vmatprep.subr.mxu0 0.0
    %140 = vmatpush1.msra.mxu0 0.0
    %141 = vmatprep.subr.mxu0 0.0
    %142 = vmatpush1.msra.mxu0 0.0
    %143 = vmatprep.subr.mxu0 0.0
    %144 = vmatpush1.msra.mxu0 0.0
    %145 = vmatprep.subr.mxu0 0.0
    %146 = vmatpush1.msra.mxu0 0.0
    %147 = vmatprep.subr.mxu0 0.0
    %148 = vmatpush1.msra.mxu0 0.0
    %149 = vmatprep.subr.mxu0 0.0
    %150 = vmatpush1.msra.mxu0 0.0
    %151 = vmatprep.subr.mxu0 0.0
    %152 = vmatpush1.msra.mxu0 0.0
    %153 = vmatprep.subr.mxu0 0.0
    %154 = vmatpush1.msra.mxu0 0.0
    %155 = vmatprep.subr.mxu0 0.0
    %156 = vmatpush1.msra.mxu0 0.0
    %157 = vmatprep.subr.mxu0 0.0
    %158 = vmatpush1.msra.mxu0 0.0
    %159 = vmatprep.subr.mxu0 0.0
    %160 = vmatpush1.msra.mxu0 0.0
    %161 = vmatprep.subr.mxu0 0.0
    %162 = vmatpush1.msra.mxu0 0.0
    %163 = vmatprep.subr.mxu0 0.0
    %164 = vmatpush1.msra.mxu0 0.0
    %165 = vmatprep.subr.mxu0 0.0
    %166 = vmatpush1.msra.mxu0 0.0
    %167 = vmatprep.subr.mxu0 0.0
    %168 = vmatpush1.msra.mxu0 %v130
    %169 = vmatprep.subr.mxu0 0.0
    %170 = vmatpush2.msra.mxu0 0.0
    %171 = vmatprep.subr.mxu0 0.0
    %172 = vmatpush2.msra.mxu0 0.0
    %173 = vmatprep.subr.mxu0 0.0
    %174 = vmatpush2.msra.mxu0 0.0
    %175 = vmatprep.subr.mxu0 0.0
    %176 = vmatpush2.msra.mxu0 0.0
    %177 = vmatprep.subr.mxu0 0.0
    %178 = vmatpush2.msra.mxu0 0.0
    %179 = vmatprep.subr.mxu0 0.0
    %180 = vmatpush2.msra.mxu0 0.0
    %181 = vmatprep.subr.mxu0 0.0
    %182 = vmatpush2.msra.mxu0 0.0
    %183 = vmatprep.subr.mxu0 0.0
    %184 = vmatpush2.msra.mxu0 0.0
    %185 = vmatprep.subr.mxu0 0.0
    %186 = vmatpush2.msra.mxu0 0.0
    %187 = vmatprep.subr.mxu0 0.0
    %188 = vmatpush2.msra.mxu0 0.0
    %189 = vmatprep.subr.mxu0 0.0
    %190 = vmatpush2.msra.mxu0 0.0
    %191 = vmatprep.subr.mxu0 0.0
    %192 = vmatpush2.msra.mxu0 0.0
    %193 = vmatprep.subr.mxu0 0.0
    %194 = vmatpush2.msra.mxu0 0.0
    %195 = vmatprep.subr.mxu0 0.0
    %196 = vmatpush2.msra.mxu0 0.0
    %197 = vmatprep.subr.mxu0 0.0
    %198 = vmatpush2.msra.mxu0 0.0
    %199 = vmatprep.subr.mxu0 0.0
    %200 = vmatpush2.msra.mxu0 0.0
    %201 = vmatprep.mubr.f32.mxu0 0.0
    %202 = vmatmul.mubr.f32.gmra.mxu0 %v135
    %v203 = vpop.f32.mrf.mxu0
    %v204 = vadd.f32 0.0, %v203
    %v205 = vpop.f32.mrf.mxu0
    %206 = vdwg.mxu0
    %v208 = vsel %vm133, %v131, 0
    %210 = vmatprep.subr.mxu0 0.0
    %211 = vmatpush1.msra.mxu0 0.0
    %212 = vmatprep.subr.mxu0 0.0
    %213 = vmatpush1.msra.mxu0 0.0
    %214 = vmatprep.subr.mxu0 0.0
    %215 = vmatpush1.msra.mxu0 0.0
    %216 = vmatprep.subr.mxu0 0.0
    %217 = vmatpush1.msra.mxu0 0.0
    %218 = vmatprep.subr.mxu0 0.0
    %219 = vmatpush1.msra.mxu0 0.0
    %220 = vmatprep.subr.mxu0 0.0
    %221 = vmatpush1.msra.mxu0 0.0
    %222 = vmatprep.subr.mxu0 0.0
    %223 = vmatpush1.msra.mxu0 0.0
    %224 = vmatprep.subr.mxu0 0.0
    %225 = vmatpush1.msra.mxu0 0.0
    %226 = vmatprep.subr.mxu0 0.0
    %227 = vmatpush1.msra.mxu0 0.0
    %228 = vmatprep.subr.mxu0 0.0
    %229 = vmatpush1.msra.mxu0 0.0
    %230 = vmatprep.subr.mxu0 0.0
    %231 = vmatpush1.msra.mxu0 0.0
    %232 = vmatprep.subr.mxu0 0.0
    %233 = vmatpush1.msra.mxu0 0.0
    %234 = vmatprep.subr.mxu0 0.0
    %235 = vmatpush1.msra.mxu0 0.0
    %236 = vmatprep.subr.mxu0 0.0
    %237 = vmatpush1.msra.mxu0 0.0
    %238 = vmatprep.subr.mxu0 0.0
    %239 = vmatpush1.msra.mxu0 0.0
    %240 = vmatprep.subr.mxu0 0.0
    %241 = vmatpush1.msra.mxu0 %v129
    %242 = vmatprep.subr.mxu0 0.0
    %243 = vmatpush2.msra.mxu0 0.0
    %244 = vmatprep.subr.mxu0 0.0
    %245 = vmatpush2.msra.mxu0 0.0
    %246 = vmatprep.subr.mxu0 0.0
    %247 = vmatpush2.msra.mxu0 0.0
    %248 = vmatprep.subr.mxu0 0.0
    %249 = vmatpush2.msra.mxu0 0.0
    %250 = vmatprep.subr.mxu0 0.0
    %251 = vmatpush2.msra.mxu0 0.0
    %252 = vmatprep.subr.mxu0 0.0
    %253 = vmatpush2.msra.mxu0 0.0
    %254 = vmatprep.subr.mxu0 0.0
    %255 = vmatpush2.msra.mxu0 0.0
    %256 = vmatprep.subr.mxu0 0.0
    %257 = vmatpush2.msra.mxu0 0.0
    %258 = vmatprep.subr.mxu0 0.0
    %259 = vmatpush2.msra.mxu0 0.0
    %260 = vmatprep.subr.mxu0 0.0
    %261 = vmatpush2.msra.mxu0 0.0
    %262 = vmatprep.subr.mxu0 0.0
    %263 = vmatpush2.msra.mxu0 0.0
    %264 = vmatprep.subr.mxu0 0.0
    %265 = vmatpush2.msra.mxu0 0.0
    %266 = vmatprep.subr.mxu0 0.0
    %267 = vmatpush2.msra.mxu0 0.0
    %268 = vmatprep.subr.mxu0 0.0
    %269 = vmatpush2.msra.mxu0 0.0
    %270 = vmatprep.subr.mxu0 0.0
    %271 = vmatpush2.msra.mxu0 0.0
    %272 = vmatprep.subr.mxu0 0.0
    %273 = vmatpush2.msra.mxu0 0.0
    %274 = vmatprep.mubr.f32.mxu0 0.0
    %275 = vmatmul.mubr.f32.gmra.mxu0 %v208
    %v276 = vpop.f32.mrf.mxu0
    %v277 = vadd.f32 %v204, %v276
    %v278 = vpop.f32.mrf.mxu0
    %279 = vdwg.mxu0
    %v280 = vsel %vm133, %v277, -inf
    %v281 = vrot.slane %v280, 4
    %v282 = vmax.f32 %v280, %v281
    %v283 = vrot.slane %v282, 2
    %v284 = vmax.f32 %v282, %v283
    %v285 = vrot.slane %v284, 1
    %v286 = vmax.f32 %v284, %v285
    %v287 = vlaneseq
    %v288 = vshrl.u32 %v287, 7
    %vm289 = vcmp.ge.f32.partialorder %v277, %v286
    %v290 = vsel %vm289, %v288, 8
    %v291 = vsel %vm133, %v290, 2147483647
    %v292 = vrot.slane %v291, 4
    %vm293 = vcmp.lt.s32.totalorder %v291, %v292
    %v294 = vsel %vm293, %v291, %v292
    %v295 = vrot.slane %v294, 2
    %vm296 = vcmp.lt.s32.totalorder %v294, %v295
    %v297 = vsel %vm296, %v294, %v295
    %v298 = vrot.slane %v297, 1
    %vm299 = vcmp.lt.s32.totalorder %v297, %v298
    %v300 = vsel %vm299, %v297, %v298
    %vm301 = vcmp.eq.s32.totalorder %v288, %v300
    %v302 = vld [vmem:[%s5] sm:$0xff]
    %303 = vset.pattern.permute.xlu0 0
    %304 = vperm.xlu0 %303, %v302
    %v305 = vpop.permute.xlu0 %304
    %v306 = vsel %vm301, %v305, 0
    %v307 = vsel %vm133, %v306, 2147483648
    %v308 = vrot.slane %v307, 4
    %vm309 = vcmp.gt.s32.totalorder %v307, %v308
    %v310 = vsel %vm309, %v307, %v308
    %v311 = vrot.slane %v310, 2
    %vm312 = vcmp.gt.s32.totalorder %v310, %v311
    %v313 = vsel %vm312, %v310, %v311
    %v314 = vrot.slane %v313, 1
    %vm315 = vcmp.gt.s32.totalorder %v313, %v314
    %v316 = vsel %vm315, %v313, %v314
    %vm317 = vcmask 57344
    %318 = vst.msk [vmem:[#allocation5] sm:$0x1] %vm317, %v316
    // Predicated region
    $region30: #{tpu_custom_call.1} parent=1 // pred_check
      _
    $region31: #{tpu_custom_call.1} parent=1 // pred_check_branch
      %320 = sbr.rel (0) target = $region33
    $region32: #{tpu_custom_call.1} parent=1 // pred_region
      %s322 = ssub.s32 16, 16
      %323 = vsyncadd [#allocation4], %s322
      %s325 = sshll.u32 [#allocation5], 4
      %s326 = int_to_ptr.vmem [resolvable:$true] %s325
      %328 = dma.vmem_to_hbm [thread:$0]  %s326, 16, %s6, [#allocation4]
    $region33: #{tpu_custom_call.1} parent=1 // pred_fallthru
      _
    // Predicated region
    $region34: #{tpu_custom_call.1} parent=1 // pred_check
      _
    $region35: #{tpu_custom_call.1} parent=1 // pred_check_branch
      %330 = sbr.rel (0) target = $region37
    $region36: #{tpu_custom_call.1} parent=1 // pred_region
      %331 = dma.done [#allocation4], 16
    $region37: #{tpu_custom_call.1} parent=1 // pred_fallthru
      _
    %332 = vsyncpa [#allocation3], 1
    %333 = vsyncpa [#allocation4], 1

</llo_original>
